<compile_context>
chip_gen: v5e
topology: v5e:2x2
jax: 0.10.0
libtpu: 0.0.40
codegen_flags: <defaults>
</compile_context>

<pallas_src>
import functools

import numpy as np
import jax
import jax.numpy as jnp
from jax.experimental import pallas as pl
from jax.experimental.pallas import tpu as pltpu

BN_EPS = 1e-5


def _round_up(x, m):
    return (x + m - 1) // m * m


def _ffn_kernel(x_ref, w1_ref, b1_ref, w2_ref, shift_ref, o_ref, acc_ref):
    # Grid: (batch tiles [parallel], d_ff chunks [arbitrary / reduction]).
    # x_ref:     (tb, model_dim)     compute dtype (f32 or bf16)
    # w1_ref:    (model_dim, tk)     compute dtype
    # b1_ref:    (1, tk)             f32
    # w2_ref:    (tk, pre_pad)       compute dtype, BN scale pre-folded
    # shift_ref: (1, pre_pad)        f32  (folded bias + BN shift)
    # o_ref:     (tb, pre_pad)       output dtype
    # acc_ref:   (tb, pre_pad)       f32 VMEM accumulator
    k = pl.program_id(1)

    @pl.when(k == 0)
    def _init():
        acc_ref[...] = jnp.zeros_like(acc_ref)

    # ff1 chunk (MXU, f32 accumulation) + bias + ReLU in f32.
    h = jnp.dot(x_ref[...], w1_ref[...], preferred_element_type=jnp.float32)
    h = jnp.maximum(h + b1_ref[...], 0.0)

    # TODO(synk): training-mode dropout (stochastic masking) not implemented; eval-mode
    # dropout is an identity.

    # ff2 chunk (BN scale already folded into w2), accumulated in f32.
    acc_ref[...] += jnp.dot(h.astype(w2_ref.dtype), w2_ref[...],
                            preferred_element_type=jnp.float32)

    @pl.when(k == pl.num_programs(1) - 1)
    def _finalize():
        o_ref[...] = (acc_ref[...] + shift_ref[...]).astype(o_ref.dtype)


@functools.partial(jax.jit,
                   static_argnames=("block_batch", "block_dff", "compute_dtype"))
def ffn_forward(x, w1_t, b1, w2_t, b2, gamma, beta, running_mean, running_var,
                block_batch=256, block_dff=512, compute_dtype=jnp.float32):
    n, model_dim = x.shape
    d_ff = w1_t.shape[1]
    pre_dim = w2_t.shape[1]
    out_dtype = x.dtype

    # ---- Fold eval-mode BatchNorm1d into the second linear (all f32). ----
    scale = gamma * jax.lax.rsqrt(running_var + BN_EPS)          # (pre_dim,)
    w2_eff = w2_t * scale[None, :]                               # (d_ff, pre_dim)
    shift = (b2 - running_mean) * scale + beta                   # (pre_dim,)

    # ---- Tile / padding choices. ----
    pre_pad = _round_up(pre_dim, 128)            # lane-dense output stores
    tk = min(block_dff, _round_up(d_ff, 128))    # d_ff chunk (multiple of 128)
    dff_pad = _round_up(d_ff, tk)

    tile_b = min(block_batch, _round_up(n, 8))
    n_pad = _round_up(n, tile_b)
    nb = n_pad // tile_b
    # Prefer >=2 batch tiles so the "parallel" axis can shard across 2 TCs (v7x).
    if nb == 1 and tile_b > 8 and n > 8:
        tile_b = max(8, _round_up(tile_b // 2, 8))
        n_pad = _round_up(n, tile_b)
        nb = n_pad // tile_b
    nk = dff_pad // tk

    # ---- Pad & cast operands (zero padding keeps the math exact). ----
    x_p = jnp.pad(x, ((0, n_pad - n), (0, 0))).astype(compute_dtype)
    w1_p = jnp.pad(w1_t, ((0, 0), (0, dff_pad - d_ff))).astype(compute_dtype)
    b1_p = jnp.pad(b1, ((0, dff_pad - d_ff),)).astype(jnp.float32).reshape(1, dff_pad)
    w2_p = jnp.pad(w2_eff, ((0, dff_pad - d_ff),
                            (0, pre_pad - pre_dim))).astype(compute_dtype)
    shift_p = jnp.pad(shift, ((0, pre_pad - pre_dim),)).astype(jnp.float32)
    shift_p = shift_p.reshape(1, pre_pad)

    # ---- VMEM budget (double-buffered tiles + f32 accumulator), clamped for v7x. ----
    cbytes = np.dtype(compute_dtype).itemsize
    obytes = np.dtype(out_dtype).itemsize
    est = 2 * (tile_b * model_dim * cbytes      # x tile
               + model_dim * tk * cbytes        # W1 chunk
               + tk * 4                         # b1 chunk
               + tk * pre_pad * cbytes          # W2 chunk
               + pre_pad * 4                    # shift
               + tile_b * pre_pad * obytes)     # out tile
    est += tile_b * pre_pad * 4                 # accumulator scratch
    vmem_limit = int(min(max(2 * est, 32 * 1024 * 1024), 64 * 1024 * 1024))

    out_padded = pl.pallas_call(
        _ffn_kernel,
        out_shape=jax.ShapeDtypeStruct((n_pad, pre_pad), out_dtype),
        grid_spec=pltpu.PrefetchScalarGridSpec(
            num_scalar_prefetch=0,
            grid=(nb, nk),
            in_specs=[
                pl.BlockSpec((tile_b, model_dim), lambda i, k: (i, 0)),   # x tile
                pl.BlockSpec((model_dim, tk),     lambda i, k: (0, k)),   # W1^T chunk
                pl.BlockSpec((1, tk),             lambda i, k: (0, k)),   # b1 chunk
                pl.BlockSpec((tk, pre_pad),       lambda i, k: (k, 0)),   # W2_eff chunk
                pl.BlockSpec((1, pre_pad),        lambda i, k: (0, 0)),   # BN shift
            ],
            out_specs=pl.BlockSpec((tile_b, pre_pad), lambda i, k: (i, 0)),
            scratch_shapes=[pltpu.VMEM((tile_b, pre_pad), jnp.float32)],
        ),
        compiler_params=pltpu.CompilerParams(
            dimension_semantics=("parallel", "arbitrary"),
            vmem_limit_bytes=vmem_limit),
    )(x_p, w1_p, b1_p, w2_p, shift_p)

    return out_padded[:n, :pre_dim]


def ffn_reference(x, w1_t, b1, w2_t, b2, gamma, beta, running_mean, running_var):
    """Pure-JAX reference matching the PyTorch module in eval mode."""
    h = jnp.maximum(x @ w1_t + b1, 0.0)
    y = h @ w2_t + b2
    return (y - running_mean) / jnp.sqrt(running_var + BN_EPS) * gamma + beta


if __name__ == "__main__":
    # Small shapes implied by the module: x is (batch, model_dimension).
    batch = 8
    model_dimension = 32
    d_ff = 64
    pre_dim = 16

    key = jax.random.PRNGKey(0)
    kx, k1, kb1, k2, kb2, kg, kb, krm, krv = jax.random.split(key, 9)

    x = jax.random.normal(kx, (batch, model_dimension), dtype=jnp.float32)

    # Deterministic parameter init (synthetic, not a checkpoint load).
    # Linear weights pre-transposed: [in_features, out_features].
    w1_t = jax.random.normal(k1, (model_dimension, d_ff), dtype=jnp.float32) * 0.1
    b1 = jax.random.normal(kb1, (d_ff,), dtype=jnp.float32) * 0.1
    w2_t = jax.random.normal(k2, (d_ff, pre_dim), dtype=jnp.float32) * 0.1
    b2 = jax.random.normal(kb2, (pre_dim,), dtype=jnp.float32) * 0.1

    # BatchNorm1d(pre_dim) parameters / running stats.
    gamma = 1.0 + 0.1 * jax.random.normal(kg, (pre_dim,), dtype=jnp.float32)
    beta = 0.1 * jax.random.normal(kb, (pre_dim,), dtype=jnp.float32)
    running_mean = 0.1 * jax.random.normal(krm, (pre_dim,), dtype=jnp.float32)
    running_var = 1.0 + 0.1 * jax.random.uniform(krv, (pre_dim,), dtype=jnp.float32)

    ref = ffn_reference(x, w1_t, b1, w2_t, b2, gamma, beta, running_mean, running_var)

    # f32 compute path: tight tolerance vs reference.
    out_f32 = ffn_forward(x, w1_t, b1, w2_t, b2, gamma, beta,
                          running_mean, running_var,
                          compute_dtype=jnp.float32)
    out_f32 = jax.block_until_ready(out_f32)
    assert out_f32.shape == (batch, pre_dim)
    assert jnp.allclose(out_f32, ref, atol=1e-4, rtol=1e-4), "f32 mismatch vs reference"

    # bf16 MXU path (f32 accumulation): looser tolerance from bf16 input rounding.
    out_bf16 = ffn_forward(x, w1_t, b1, w2_t, b2, gamma, beta,
                           running_mean, running_var,
                           compute_dtype=jnp.bfloat16)
    out_bf16 = jax.block_until_ready(out_bf16)
    assert out_bf16.shape == (batch, pre_dim)
    assert jnp.allclose(out_bf16, ref, atol=3e-2, rtol=3e-2), "bf16 mismatch vs reference"

    print("KERNEL_OK")
</pallas_src>

<mosaic_0001>
module attributes {stable_mosaic.version = 11 : i64} {
  func.func @_ffn_kernel(%arg0: i32, %arg1: i32, %arg2: memref<8x32xf32, #tpu.memory_space<vmem>>, %arg3: memref<32x128xf32, #tpu.memory_space<vmem>>, %arg4: memref<1x128xf32, #tpu.memory_space<vmem>>, %arg5: memref<128x128xf32, #tpu.memory_space<vmem>>, %arg6: memref<1x128xf32, #tpu.memory_space<vmem>>, %arg7: memref<8x128xf32, #tpu.memory_space<vmem>>, %arg8: memref<8x128xf32, #tpu.memory_space<vmem>>) attributes {dimension_semantics = [#tpu.dimension_semantics<parallel>, #tpu.dimension_semantics<arbitrary>], iteration_bounds = array<i64: 1, 1>, scalar_prefetch = 0 : i64, scratch_operands = 1 : i64, tpu.core_type = #tpu.core_type<tc>, window_params = [{transform_indices = @transform_0, window_bounds = array<i64: 8, 32>}, {transform_indices = @transform_1, window_bounds = array<i64: 32, 128>}, {transform_indices = @transform_2, window_bounds = array<i64: 1, 128>}, {transform_indices = @transform_3, window_bounds = array<i64: 128, 128>}, {pipeline_mode = #tpu.pipeline_mode<synchronous>, transform_indices = @transform_4, window_bounds = array<i64: 1, 128>}, {transform_indices = @transform_5, window_bounds = array<i64: 8, 128>}]} {
    %c0_i32 = arith.constant 0 : i32
    %0 = arith.cmpi eq, %arg1, %c0_i32 : i32
    %1 = arith.extui %0 : i1 to i32
    %c0_i32_0 = arith.constant 0 : i32
    %2 = arith.cmpi ne, %1, %c0_i32_0 : i32
    scf.if %2 {
      %cst_16 = arith.constant 0.000000e+00 : f32
      %19 = vector.broadcast %cst_16 : f32 to vector<8x128xf32>
      %c0_17 = arith.constant 0 : index
      %c0_18 = arith.constant 0 : index
      %20 = vector.load %arg8[%c0_17, %c0_18] : memref<8x128xf32, #tpu.memory_space<vmem>>, vector<8x128xf32>
      tpu.vector_store %arg8[%c0_17, %c0_18], %19 {strides = array<i32>} : memref<8x128xf32, #tpu.memory_space<vmem>>, vector<8x128xf32>,
    } else {
    }
    %c0 = arith.constant 0 : index
    %c0_1 = arith.constant 0 : index
    %3 = vector.load %arg2[%c0, %c0_1] : memref<8x32xf32, #tpu.memory_space<vmem>>, vector<8x32xf32>
    %c0_2 = arith.constant 0 : index
    %c0_3 = arith.constant 0 : index
    %4 = vector.load %arg3[%c0_2, %c0_3] : memref<32x128xf32, #tpu.memory_space<vmem>>, vector<32x128xf32>
    %cst = arith.constant dense<0.000000e+00> : vector<8x128xf32>
    %5 = tpu.matmul %3, %4, %cst {dimension_numbers = #tpu.dot_dimension_numbers<[1], [0], [0], [1], [0, 0, 1, 1], [], []>} : vector<8x32xf32>, vector<32x128xf32>, vector<8x128xf32> -> vector<8x128xf32>
    %c0_4 = arith.constant 0 : index
    %c0_5 = arith.constant 0 : index
    %6 = vector.load %arg4[%c0_4, %c0_5] : memref<1x128xf32, #tpu.memory_space<vmem>>, vector<1x128xf32>
    %7 = vector.broadcast %6 : vector<1x128xf32> to vector<8x128xf32>
    %8 = arith.addf %5, %7 : vector<8x128xf32>
    %cst_6 = arith.constant 0.000000e+00 : f32
    %9 = vector.broadcast %cst_6 : f32 to vector<8x128xf32>
    %10 = arith.maximumf %8, %9 : vector<8x128xf32>
    %c0_7 = arith.constant 0 : index
    %c0_8 = arith.constant 0 : index
    %11 = vector.load %arg8[%c0_7, %c0_8] : memref<8x128xf32, #tpu.memory_space<vmem>>, vector<8x128xf32>
    %c0_9 = arith.constant 0 : index
    %c0_10 = arith.constant 0 : index
    %12 = vector.load %arg5[%c0_9, %c0_10] : memref<128x128xf32, #tpu.memory_space<vmem>>, vector<128x128xf32>
    %cst_11 = arith.constant dense<0.000000e+00> : vector<8x128xf32>
    %13 = tpu.matmul %10, %12, %cst_11 {dimension_numbers = #tpu.dot_dimension_numbers<[1], [0], [0], [1], [0, 0, 1, 1], [], []>} : vector<8x128xf32>, vector<128x128xf32>, vector<8x128xf32> -> vector<8x128xf32>
    %14 = arith.addf %11, %13 : vector<8x128xf32>
    %c0_12 = arith.constant 0 : index
    %c0_13 = arith.constant 0 : index
    %15 = vector.load %arg8[%c0_12, %c0_13] : memref<8x128xf32, #tpu.memory_space<vmem>>, vector<8x128xf32>
    tpu.vector_store %arg8[%c0_12, %c0_13], %14 {strides = array<i32>} : memref<8x128xf32, #tpu.memory_space<vmem>>, vector<8x128xf32>,
    %c0_i32_14 = arith.constant 0 : i32
    %16 = arith.cmpi eq, %arg1, %c0_i32_14 : i32
    %17 = arith.extui %16 : i1 to i32
    %c0_i32_15 = arith.constant 0 : i32
    %18 = arith.cmpi ne, %17, %c0_i32_15 : i32
    scf.if %18 {
      %c0_16 = arith.constant 0 : index
      %c0_17 = arith.constant 0 : index
      %19 = vector.load %arg8[%c0_16, %c0_17] : memref<8x128xf32, #tpu.memory_space<vmem>>, vector<8x128xf32>
      %c0_18 = arith.constant 0 : index
      %c0_19 = arith.constant 0 : index
      %20 = vector.load %arg6[%c0_18, %c0_19] : memref<1x128xf32, #tpu.memory_space<vmem>>, vector<1x128xf32>
      %21 = vector.broadcast %20 : vector<1x128xf32> to vector<8x128xf32>
      %22 = arith.addf %19, %21 : vector<8x128xf32>
      %c0_20 = arith.constant 0 : index
      %c0_21 = arith.constant 0 : index
      %23 = vector.load %arg7[%c0_20, %c0_21] : memref<8x128xf32, #tpu.memory_space<vmem>>, vector<8x128xf32>
      tpu.vector_store %arg7[%c0_20, %c0_21], %22 {strides = array<i32>} : memref<8x128xf32, #tpu.memory_space<vmem>>, vector<8x128xf32>,
    } else {
    }
    return
  }
  func.func @transform_0(%arg0: i32, %arg1: i32) -> (i32, i32) {
    %c0_i32 = arith.constant 0 : i32
    %c0_i32_0 = arith.constant 0 : i32
    return %arg0, %c0_i32 : i32, i32
  }
  func.func @transform_1(%arg0: i32, %arg1: i32) -> (i32, i32) {
    %c0_i32 = arith.constant 0 : i32
    %c0_i32_0 = arith.constant 0 : i32
    return %c0_i32, %arg1 : i32, i32
  }
  func.func @transform_2(%arg0: i32, %arg1: i32) -> (i32, i32) {
    %c0_i32 = arith.constant 0 : i32
    %c0_i32_0 = arith.constant 0 : i32
    return %c0_i32, %arg1 : i32, i32
  }
  func.func @transform_3(%arg0: i32, %arg1: i32) -> (i32, i32) {
    %c0_i32 = arith.constant 0 : i32
    %c0_i32_0 = arith.constant 0 : i32
    return %arg1, %c0_i32 : i32, i32
  }
  func.func @transform_4(%arg0: i32, %arg1: i32) -> (i32, i32) {
    %c0_i32 = arith.constant 0 : i32
    %c0_i32_0 = arith.constant 0 : i32
    %c0_i32_1 = arith.constant 0 : i32
    return %c0_i32, %c0_i32_0 : i32, i32
  }
  func.func @transform_5(%arg0: i32, %arg1: i32) -> (i32, i32) {
    %c0_i32 = arith.constant 0 : i32
    %c0_i32_0 = arith.constant 0 : i32
    return %arg0, %c0_i32 : i32, i32
  }
}

</mosaic_0001>

<llo_original>
// kernel: ffn_forward.1
$region0: #{ffn_forward.1}
  #allocation0 [shape = 'u32[]', space=smem, size = 0x4, offset = 0x4, fixed_abs, tag = 'smem constant byte address 0x4 - core index']
  #allocation1 [shape = 'u32[72,128]{1,0:T(1,128)}', space=vmem, size = 0x9000, scoped, tag = 'internal scratch']
  #allocation2 [shape = 'f32[8,128]{1,0:T(8,128)}', space=vmem, size = 0x1000, scoped, tag = 'scratch operand']
  %s0 = inlined_call_operand.vmem [shape: f32[8,32], index: 0, kind: input, shape index: {}]
  %s1 = inlined_call_operand.vmem [shape: f32[32,128], index: 1, kind: input, shape index: {}]
  %s2 = inlined_call_operand.vmem [shape: f32[1,128], index: 2, kind: input, shape index: {}]
  %s3 = inlined_call_operand.vmem [shape: f32[128,128], index: 3, kind: input, shape index: {}]
  %s4 = inlined_call_operand.vmem [shape: f32[1,128], index: 4, kind: input, shape index: {}]
  %s5 = inlined_call_operand.hbm [shape: f32[8,128], index: 5, kind: output, shape index: {}]
  %s6 = sld [smem:[#allocation0]]
  $region38: #{ffn_forward.1} parent=0
    _
  %s8 = ssub.s32 1, %s6
  %s9 = scalar_select 0, %s8, %s6
  $region1: #{ffn_forward.1} parent=0
    #allocation3 [shape = 'u8[4096]{0}', space=vmem, size = 0x1000, scoped, tag = 'output window, operand 0, single buffered']
    #allocation4 [shape = 's32[1]{0}', space=sflag, size = 0x4, scoped, tag = 'scoped memory for ffn_forward.1']
    %10 = vsyncpa [#allocation4], 0
    // Predicated region
    $region2: #{ffn_forward.1} parent=1 // pred_check
      _
    $region3: #{ffn_forward.1} parent=1 // pred_check_branch
      %12 = sbr.rel (0) target = $region5
    $region4: #{ffn_forward.1} parent=1 // pred_region
      _
    $region5: #{ffn_forward.1} parent=1 // pred_fallthru
      _
    // Predicated region
    $region6: #{ffn_forward.1} parent=1 // pred_check
      _
    $region7: #{ffn_forward.1} parent=1 // pred_check_branch
      %14 = sbr.rel (0) target = $region9
    $region8: #{ffn_forward.1} parent=1 // pred_region
      _
    $region9: #{ffn_forward.1} parent=1 // pred_fallthru
      _
    // Predicated region
    $region10: #{ffn_forward.1} parent=1 // pred_check
      _
    $region11: #{ffn_forward.1} parent=1 // pred_check_branch
      %16 = sbr.rel (0) target = $region13
    $region12: #{ffn_forward.1} parent=1 // pred_region
      _
    $region13: #{ffn_forward.1} parent=1 // pred_fallthru
      _
    // Predicated region
    $region14: #{ffn_forward.1} parent=1 // pred_check
      _
    $region15: #{ffn_forward.1} parent=1 // pred_check_branch
      %18 = sbr.rel (0) target = $region17
    $region16: #{ffn_forward.1} parent=1 // pred_region
      _
    $region17: #{ffn_forward.1} parent=1 // pred_fallthru
      _
    // Predicated region
    $region18: #{ffn_forward.1} parent=1 // pred_check
      _
    $region19: #{ffn_forward.1} parent=1 // pred_check_branch
      %20 = sbr.rel (0) target = $region21
    $region20: #{ffn_forward.1} parent=1 // pred_region
      _
    $region21: #{ffn_forward.1} parent=1 // pred_fallthru
      _
    %p21 = scmp.eq.s32.totalorder 0, 0
    // Predicated region
    $region22: #{ffn_forward.1} parent=1 // pred_check
      %p22 = pneg %p21
    $region23: #{ffn_forward.1} parent=1 // pred_check_branch
      %24 = sbr.rel (%p22) target = $region25
    $region24: #{ffn_forward.1} parent=1 // pred_region
      %25 = vst [vmem:[#allocation2] sm:$0xff] 0.0
    $region25: #{ffn_forward.1} parent=1 // pred_fallthru
      _
    %v26 = vld [vmem:[%s0] sm:$0xff]
    %v27 = vld [vmem:[%s1] sm:$0xff]
    %v28 = vld [vmem:[%s1 + $0x8] sm:$0xff]
    %v29 = vld [vmem:[%s1 + $0x10] sm:$0xff]
    %v30 = vld [vmem:[%s1 + $0x18] sm:$0xff]
    %v31 = vld [vmem:[%s2] sm:$0x1]
    %v33 = vperm.slane %v31, 0
    %vm35 = vcmask 261120
    %v37 = vsel %vm35, %v26, 0
    %39 = vmatpush.msra.mxu0 0.0
    %40 = vmatpush.msra.mxu0 0.0
    %41 = vmatpush.msra.mxu0 0.0
    %42 = vmatpush.msra.mxu0 0.0
    %43 = vmatpush.msra.mxu0 0.0
    %44 = vmatpush.msra.mxu0 0.0
    %45 = vmatpush.msra.mxu0 0.0
    %46 = vmatpush.msra.mxu0 0.0
    %47 = vmatpush.msra.mxu0 0.0
    %48 = vmatpush.msra.mxu0 0.0
    %49 = vmatpush.msra.mxu0 0.0
    %50 = vmatpush.msra.mxu0 0.0
    %51 = vmatpush.msra.mxu0 %v30
    %52 = vmatpush.msra.mxu0 %v29
    %53 = vmatpush.msra.mxu0 %v28
    %54 = vmatpush.msra.mxu0 %v27
    %55 = vmatmul.f32.gmra.mxu0 %v37
    %v56 = vpop.f32.mrf.mxu0
    %v57 = vadd.f32 %v33, %v56
    %58 = vdwg.mxu0
    %v59 = vmax.f32 %v57, 0.0
    %v60 = vld [vmem:[#allocation2] sm:$0xff]
    %v61 = vld [vmem:[%s3] sm:$0xff]
    %v62 = vld [vmem:[%s3 + $0x8] sm:$0xff]
    %v63 = vld [vmem:[%s3 + $0x10] sm:$0xff]
    %v64 = vld [vmem:[%s3 + $0x18] sm:$0xff]
    %v65 = vld [vmem:[%s3 + $0x20] sm:$0xff]
    %v66 = vld [vmem:[%s3 + $0x28] sm:$0xff]
    %v67 = vld [vmem:[%s3 + $0x30] sm:$0xff]
    %v68 = vld [vmem:[%s3 + $0x38] sm:$0xff]
    %v69 = vld [vmem:[%s3 + $0x40] sm:$0xff]
    %v70 = vld [vmem:[%s3 + $0x48] sm:$0xff]
    %v71 = vld [vmem:[%s3 + $0x50] sm:$0xff]
    %v72 = vld [vmem:[%s3 + $0x58] sm:$0xff]
    %v73 = vld [vmem:[%s3 + $0x60] sm:$0xff]
    %v74 = vld [vmem:[%s3 + $0x68] sm:$0xff]
    %v75 = vld [vmem:[%s3 + $0x70] sm:$0xff]
    %v76 = vld [vmem:[%s3 + $0x78] sm:$0xff]
    %77 = vmatpush.msra.mxu0 %v76
    %78 = vmatpush.msra.mxu0 %v75
    %79 = vmatpush.msra.mxu0 %v74
    %80 = vmatpush.msra.mxu0 %v73
    %81 = vmatpush.msra.mxu0 %v72
    %82 = vmatpush.msra.mxu0 %v71
    %83 = vmatpush.msra.mxu0 %v70
    %84 = vmatpush.msra.mxu0 %v69
    %85 = vmatpush.msra.mxu0 %v68
    %86 = vmatpush.msra.mxu0 %v67
    %87 = vmatpush.msra.mxu0 %v66
    %88 = vmatpush.msra.mxu0 %v65
    %89 = vmatpush.msra.mxu0 %v64
    %90 = vmatpush.msra.mxu0 %v63
    %91 = vmatpush.msra.mxu0 %v62
    %92 = vmatpush.msra.mxu0 %v61
    %93 = vmatmul.f32.gmra.mxu0 %v59
    %v94 = vpop.f32.mrf.mxu0
    %v95 = vadd.f32 0.0, %v94
    %96 = vdwg.mxu0
    %v97 = vadd.f32 %v60, %v95
    %98 = vst [vmem:[#allocation2] sm:$0xff] %v97
    // Predicated region
    $region26: #{ffn_forward.1} parent=1 // pred_check
      %p99 = pneg %p21
    $region27: #{ffn_forward.1} parent=1 // pred_check_branch
      %101 = sbr.rel (%p99) target = $region29
    $region28: #{ffn_forward.1} parent=1 // pred_region
      %v102 = vld [vmem:[#allocation2] sm:$0xff]
      %v103 = vld [vmem:[%s4] sm:$0x1]
      %v105 = vperm.slane %v103, 0
      %v107 = vadd.f32 %v102, %v105
      %108 = vst [vmem:[#allocation3] sm:$0xff] %v107
    $region29: #{ffn_forward.1} parent=1 // pred_fallthru
      _
    // Predicated region
    $region30: #{ffn_forward.1} parent=1 // pred_check
      _
    $region31: #{ffn_forward.1} parent=1 // pred_check_branch
      %110 = sbr.rel (0) target = $region33
    $region32: #{ffn_forward.1} parent=1 // pred_region
      %112 = vsyncadd [#allocation4], 0
      %s114 = sshll.u32 [#allocation3], 4
      %s115 = int_to_ptr.vmem [resolvable:$true] %s114
      %s116 = sshll.u32 %s5, 4
      %s117 = int_to_ptr.hbm [resolvable:$true] %s116
      %119 = dma.vmem_to_hbm [thread:$0]  %s115, 128, %s117, [#allocation4]
    $region33: #{ffn_forward.1} parent=1 // pred_fallthru
      _
    // Predicated region
    $region34: #{ffn_forward.1} parent=1 // pred_check
      _
    $region35: #{ffn_forward.1} parent=1 // pred_check_branch
      %121 = sbr.rel (0) target = $region37
    $region36: #{ffn_forward.1} parent=1 // pred_region
      %123 = dma.done [#allocation4], 128
    $region37: #{ffn_forward.1} parent=1 // pred_fallthru
      _
    %124 = vsyncpa [#allocation4], 1

</llo_original>
